<compile_context>
chip_gen: v6e
topology: v6e:2x2x1
jax: 0.10.0
libtpu: 0.0.40
codegen_flags: <defaults>
</compile_context>

<pallas_src>
import functools

import jax
import jax.numpy as jnp
from jax.experimental import pallas as pl
from jax.experimental.pallas import tpu as pltpu


def _linear_kernel(x_ref, m_ref, b_ref, o_ref):
    # x_ref: (R, 128*in_dim)  f32 -- 128 batch elements per view-row, features
    #                                interleaved along lanes (native layout).
    # m_ref: (128*in_dim, 128*out_dim) f32 -- constant block-diagonal weights
    #                                (index_map is constant -> fetched once).
    # b_ref: (1, 128*out_dim) f32 -- bias, repeated per batch slot.
    # o_ref: (R, 128*out_dim) f32 -- lane-dense output view.
    acc = jnp.dot(
        x_ref[...],
        m_ref[...],
        preferred_element_type=jnp.float32,
        precision=jax.lax.Precision.HIGHEST,   # exact f32 products (1e-5 tol)
    )
    o_ref[...] = (acc + b_ref[...]).astype(o_ref.dtype)


@functools.partial(jax.jit, static_argnames=("view_rows_per_tile",))
def linear_forward(x, w, b, *, view_rows_per_tile: int = 4096):
    """Compute x @ w.T + b (PyTorch nn.Linear forward).

    x: (B, in_dim) f32; w: (out_dim, in_dim) f32; b: (out_dim,) f32.
    Returns (B, out_dim) f32.
    """
    B, in_dim = x.shape
    out_dim, in_dim_w = w.shape
    assert in_dim_w == in_dim

    x = x.astype(jnp.float32)
    w = w.astype(jnp.float32)
    b = b.astype(jnp.float32)

    pad_rows = (-B) % 128
    if pad_rows:
        # Fallback for ragged batches: one extra pass over x. Callers that
        # care about peak throughput should supply B as a multiple of 128.
        x = jnp.pad(x, ((0, pad_rows), (0, 0)))
    Bp = B + pad_rows
    n = Bp // 128                 # view-rows: 128 batch elements per row
    wi = 128 * in_dim             # lane width of the x view   (384)
    wo = 128 * out_dim            # lane width of the out view (128)

    # FREE row-major reshape: batch stays contiguous, no HBM transpose.
    x_view = x.reshape(n, wi)

    # Constant block-diagonal weight matrix and bias row (tiny, built per jit).
    c = jnp.arange(wi)
    m = jnp.arange(wo)
    mat = jnp.where(
        (c[:, None] // in_dim) == (m[None, :] // out_dim),
        w[m[None, :] % out_dim, c[:, None] % in_dim],
        0.0,
    ).astype(jnp.float32)
    bias_row = jnp.tile(b, 128).reshape(1, wo)

    # Large batch tiles: 4096 view-rows = 512K batch elements per grid step
    # (~17 MiB double-buffered VMEM). Edge blocks are masked by Pallas.
    r = min(view_rows_per_tile, n)
    grid = (pl.cdiv(n, r),)

    out_view = pl.pallas_call(
        _linear_kernel,
        out_shape=jax.ShapeDtypeStruct((n, wo), jnp.float32),
        grid=grid,
        in_specs=[
            pl.BlockSpec((r, wi), lambda i: (i, 0)),    # x tile (streamed)
            pl.BlockSpec((wi, wo), lambda i: (0, 0)),   # weights (fetched once)
            pl.BlockSpec((1, wo), lambda i: (0, 0)),    # bias    (fetched once)
        ],
        out_specs=pl.BlockSpec((r, wo), lambda i: (i, 0)),
        compiler_params=pltpu.CompilerParams(
            dimension_semantics=("parallel",),          # megacore on v7x
            vmem_limit_bytes=32 * 1024 * 1024,          # safe on v7x's 64 MiB
        ),
    )(x_view, mat, bias_row)

    out = out_view.reshape(Bp, out_dim)                 # free reshape
    if pad_rows:
        out = out[:B]
    return out


if __name__ == "__main__":
    input_dim = 3
    output_dim = 1

    key = jax.random.PRNGKey(0)
    kw, kb, kx1, kx2 = jax.random.split(key, 4)

    # nn.Linear-style init: U(-1/sqrt(in_dim), 1/sqrt(in_dim))
    bound = 1.0 / float(input_dim) ** 0.5
    w = jax.random.uniform(kw, (output_dim, input_dim), jnp.float32, -bound, bound)
    b = jax.random.uniform(kb, (output_dim,), jnp.float32, -bound, bound)

    def run_case(x):
        # Script-level preprocessing from 2_2.py: x = x / sqrt(mean(x*x)),
        # folded into the weights so x is never rescaled/re-streamed in HBM:
        #   (x / k) @ W.T + b == x @ (W / k).T + b
        k = jnp.sqrt(jnp.mean(x * x))
        w_eff = w / k
        out = jax.block_until_ready(linear_forward(x, w_eff, b))
        ref = jnp.dot(x, w_eff.T, precision=jax.lax.Precision.HIGHEST) + b
        assert out.shape == (x.shape[0], output_dim)
        err = float(jnp.max(jnp.abs(out - ref)))
        assert jnp.allclose(out, ref, atol=1e-5, rtol=1e-5), err
        return out

    # Main lane-dense path: B % 128 == 0 (no transpose, no pad, no slice).
    x1 = jax.random.normal(kx1, (1024, input_dim), dtype=jnp.float32)
    run_case(x1)

    # Ragged-batch fallback path (pads 8 -> 128 rows, slices the output).
    x2 = jax.random.normal(kx2, (8, input_dim), dtype=jnp.float32)
    run_case(x2)

    print("KERNEL_OK")
</pallas_src>

<mosaic_0001>
module attributes {stable_mosaic.version = 11 : i64} {
  func.func @_linear_kernel(%arg0: i32, %arg1: memref<8x384xf32, #tpu.memory_space<vmem>>, %arg2: memref<384x128xf32, #tpu.memory_space<vmem>>, %arg3: memref<1x128xf32, #tpu.memory_space<vmem>>, %arg4: memref<8x128xf32, #tpu.memory_space<vmem>>) attributes {dimension_semantics = [#tpu.dimension_semantics<parallel>], iteration_bounds = array<i64: 1>, scalar_prefetch = 0 : i64, scratch_operands = 0 : i64, tpu.core_type = #tpu.core_type<tc>, window_params = [{transform_indices = @transform_0, window_bounds = array<i64: 8, 384>}, {pipeline_mode = #tpu.pipeline_mode<synchronous>, transform_indices = @transform_1, window_bounds = array<i64: 384, 128>}, {pipeline_mode = #tpu.pipeline_mode<synchronous>, transform_indices = @transform_2, window_bounds = array<i64: 1, 128>}, {transform_indices = @transform_3, window_bounds = array<i64: 8, 128>}]} {
    %c0 = arith.constant 0 : index
    %c0_0 = arith.constant 0 : index
    %0 = vector.load %arg1[%c0, %c0_0] : memref<8x384xf32, #tpu.memory_space<vmem>>, vector<8x384xf32>
    %c0_1 = arith.constant 0 : index
    %c0_2 = arith.constant 0 : index
    %1 = vector.load %arg2[%c0_1, %c0_2] : memref<384x128xf32, #tpu.memory_space<vmem>>, vector<384x128xf32>
    %cst = arith.constant dense<0.000000e+00> : vector<8x128xf32>
    %2 = tpu.matmul %0, %1, %cst {dimension_numbers = #tpu.dot_dimension_numbers<[1], [0], [0], [1], [0, 0, 1, 1], [], []>, precision = #tpu.contract_precision<fp32>} : vector<8x384xf32>, vector<384x128xf32>, vector<8x128xf32> -> vector<8x128xf32>
    %c0_3 = arith.constant 0 : index
    %c0_4 = arith.constant 0 : index
    %3 = vector.load %arg3[%c0_3, %c0_4] : memref<1x128xf32, #tpu.memory_space<vmem>>, vector<1x128xf32>
    %4 = vector.broadcast %3 : vector<1x128xf32> to vector<8x128xf32>
    %5 = arith.addf %2, %4 : vector<8x128xf32>
    %c0_5 = arith.constant 0 : index
    %c0_6 = arith.constant 0 : index
    %6 = vector.load %arg4[%c0_5, %c0_6] : memref<8x128xf32, #tpu.memory_space<vmem>>, vector<8x128xf32>
    tpu.vector_store %arg4[%c0_5, %c0_6], %5 {strides = array<i32>} : memref<8x128xf32, #tpu.memory_space<vmem>>, vector<8x128xf32>,
    return
  }
  func.func @transform_0(%arg0: i32) -> (i32, i32) {
    %c0_i32 = arith.constant 0 : i32
    %c0_i32_0 = arith.constant 0 : i32
    return %arg0, %c0_i32 : i32, i32
  }
  func.func @transform_1(%arg0: i32) -> (i32, i32) {
    %c0_i32 = arith.constant 0 : i32
    %c0_i32_0 = arith.constant 0 : i32
    %c0_i32_1 = arith.constant 0 : i32
    return %c0_i32, %c0_i32_0 : i32, i32
  }
  func.func @transform_2(%arg0: i32) -> (i32, i32) {
    %c0_i32 = arith.constant 0 : i32
    %c0_i32_0 = arith.constant 0 : i32
    %c0_i32_1 = arith.constant 0 : i32
    return %c0_i32, %c0_i32_0 : i32, i32
  }
  func.func @transform_3(%arg0: i32) -> (i32, i32) {
    %c0_i32 = arith.constant 0 : i32
    %c0_i32_0 = arith.constant 0 : i32
    return %arg0, %c0_i32 : i32, i32
  }
}

</mosaic_0001>

<llo_original>
// kernel: linear_forward.1
$region0: #{linear_forward.1}
  #allocation0 [shape = 'u32[]', space=smem, size = 0x4, offset = 0x4, fixed_abs, tag = 'smem constant byte address 0x4 - core index']
  #allocation1 [shape = 'u32[144,128]{1,0:T(1,128)}', space=vmem, size = 0x12000, scoped, tag = 'internal scratch']
  %s0 = inlined_call_operand.vmem [shape: f32[8,384], index: 0, kind: input, shape index: {}]
  %s1 = inlined_call_operand.vmem [shape: f32[384,128], index: 1, kind: input, shape index: {}]
  %s2 = inlined_call_operand.vmem [shape: f32[1,128], index: 2, kind: input, shape index: {}]
  %s3 = inlined_call_operand.hbm [shape: f32[8,128], index: 3, kind: output, shape index: {}]
  %s4 = sld [smem:[#allocation0]]
  $region22: #{linear_forward.1} parent=0
    _
  %s6 = ssub.s32 1, %s4
  %s7 = scalar_select 0, %s6, %s4
  $region1: #{linear_forward.1} parent=0
    #allocation2 [shape = 'u8[4096]{0}', space=vmem, size = 0x1000, scoped, tag = 'output window, operand 0, single buffered']
    #allocation3 [shape = 's32[1]{0}', space=sflag, size = 0x4, scoped, tag = 'scoped memory for linear_forward.1']
    %8 = vsyncpa [#allocation3], 0
    // Predicated region
    $region2: #{linear_forward.1} parent=1 // pred_check
      _
    $region3: #{linear_forward.1} parent=1 // pred_check_branch
      %10 = sbr.rel (0) target = $region5
    $region4: #{linear_forward.1} parent=1 // pred_region
      _
    $region5: #{linear_forward.1} parent=1 // pred_fallthru
      _
    // Predicated region
    $region6: #{linear_forward.1} parent=1 // pred_check
      _
    $region7: #{linear_forward.1} parent=1 // pred_check_branch
      %12 = sbr.rel (0) target = $region9
    $region8: #{linear_forward.1} parent=1 // pred_region
      _
    $region9: #{linear_forward.1} parent=1 // pred_fallthru
      _
    // Predicated region
    $region10: #{linear_forward.1} parent=1 // pred_check
      _
    $region11: #{linear_forward.1} parent=1 // pred_check_branch
      %14 = sbr.rel (0) target = $region13
    $region12: #{linear_forward.1} parent=1 // pred_region
      _
    $region13: #{linear_forward.1} parent=1 // pred_fallthru
      _
    %v15 = vld [vmem:[%s0] sm:$0xff]
    %v16 = vld [vmem:[%s0 + $0x8] sm:$0xff]
    %v17 = vld [vmem:[%s0 + $0x10] sm:$0xff]
    %v18 = vld [vmem:[%s1] sm:$0xff]
    %v19 = vld [vmem:[%s1 + $0x8] sm:$0xff]
    %v20 = vld [vmem:[%s1 + $0x10] sm:$0xff]
    %v21 = vld [vmem:[%s1 + $0x18] sm:$0xff]
    %v22 = vld [vmem:[%s1 + $0x20] sm:$0xff]
    %v23 = vld [vmem:[%s1 + $0x28] sm:$0xff]
    %v24 = vld [vmem:[%s1 + $0x30] sm:$0xff]
    %v25 = vld [vmem:[%s1 + $0x38] sm:$0xff]
    %v26 = vld [vmem:[%s1 + $0x40] sm:$0xff]
    %v27 = vld [vmem:[%s1 + $0x48] sm:$0xff]
    %v28 = vld [vmem:[%s1 + $0x50] sm:$0xff]
    %v29 = vld [vmem:[%s1 + $0x58] sm:$0xff]
    %v30 = vld [vmem:[%s1 + $0x60] sm:$0xff]
    %v31 = vld [vmem:[%s1 + $0x68] sm:$0xff]
    %v32 = vld [vmem:[%s1 + $0x70] sm:$0xff]
    %v33 = vld [vmem:[%s1 + $0x78] sm:$0xff]
    %v34 = vld [vmem:[%s1 + $0x80] sm:$0xff]
    %v35 = vld [vmem:[%s1 + $0x88] sm:$0xff]
    %v36 = vld [vmem:[%s1 + $0x90] sm:$0xff]
    %v37 = vld [vmem:[%s1 + $0x98] sm:$0xff]
    %v38 = vld [vmem:[%s1 + $0xa0] sm:$0xff]
    %v39 = vld [vmem:[%s1 + $0xa8] sm:$0xff]
    %v40 = vld [vmem:[%s1 + $0xb0] sm:$0xff]
    %v41 = vld [vmem:[%s1 + $0xb8] sm:$0xff]
    %v42 = vld [vmem:[%s1 + $0xc0] sm:$0xff]
    %v43 = vld [vmem:[%s1 + $0xc8] sm:$0xff]
    %v44 = vld [vmem:[%s1 + $0xd0] sm:$0xff]
    %v45 = vld [vmem:[%s1 + $0xd8] sm:$0xff]
    %v46 = vld [vmem:[%s1 + $0xe0] sm:$0xff]
    %v47 = vld [vmem:[%s1 + $0xe8] sm:$0xff]
    %v48 = vld [vmem:[%s1 + $0xf0] sm:$0xff]
    %v49 = vld [vmem:[%s1 + $0xf8] sm:$0xff]
    %v50 = vld [vmem:[%s1 + $0x100] sm:$0xff]
    %v51 = vld [vmem:[%s1 + $0x108] sm:$0xff]
    %v52 = vld [vmem:[%s1 + $0x110] sm:$0xff]
    %v53 = vld [vmem:[%s1 + $0x118] sm:$0xff]
    %v54 = vld [vmem:[%s1 + $0x120] sm:$0xff]
    %v55 = vld [vmem:[%s1 + $0x128] sm:$0xff]
    %v56 = vld [vmem:[%s1 + $0x130] sm:$0xff]
    %v57 = vld [vmem:[%s1 + $0x138] sm:$0xff]
    %v58 = vld [vmem:[%s1 + $0x140] sm:$0xff]
    %v59 = vld [vmem:[%s1 + $0x148] sm:$0xff]
    %v60 = vld [vmem:[%s1 + $0x150] sm:$0xff]
    %v61 = vld [vmem:[%s1 + $0x158] sm:$0xff]
    %v62 = vld [vmem:[%s1 + $0x160] sm:$0xff]
    %v63 = vld [vmem:[%s1 + $0x168] sm:$0xff]
    %v64 = vld [vmem:[%s1 + $0x170] sm:$0xff]
    %v65 = vld [vmem:[%s1 + $0x178] sm:$0xff]
    %v66 = vld [vmem:[%s2] sm:$0x1]
    %v68 = vlaneseq
    %v69 = vshrl.u32 %v68, 7
    %v70 = vsub.s32 0, %v69
    %v71 = vrot.slane %v66, %v70
    %73 = vmatprep.subr.mxu0 0.0
    %v74 = vand.u32 %v33, 4294901760
    %75 = vmatpush1.msra.mxu0 %v74
    %76 = vmatprep.subr.mxu0 0.0
    %v77 = vand.u32 %v32, 4294901760
    %78 = vmatpush1.msra.mxu0 %v77
    %79 = vmatprep.subr.mxu0 0.0
    %v80 = vand.u32 %v31, 4294901760
    %81 = vmatpush1.msra.mxu0 %v80
    %82 = vmatprep.subr.mxu0 0.0
    %v83 = vand.u32 %v30, 4294901760
    %84 = vmatpush1.msra.mxu0 %v83
    %85 = vmatprep.subr.mxu0 0.0
    %v86 = vand.u32 %v29, 4294901760
    %87 = vmatpush1.msra.mxu0 %v86
    %88 = vmatprep.subr.mxu0 0.0
    %v89 = vand.u32 %v28, 4294901760
    %90 = vmatpush1.msra.mxu0 %v89
    %91 = vmatprep.subr.mxu0 0.0
    %v92 = vand.u32 %v27, 4294901760
    %93 = vmatpush1.msra.mxu0 %v92
    %94 = vmatprep.subr.mxu0 0.0
    %v95 = vand.u32 %v26, 4294901760
    %96 = vmatpush1.msra.mxu0 %v95
    %97 = vmatprep.subr.mxu0 0.0
    %v98 = vand.u32 %v25, 4294901760
    %99 = vmatpush1.msra.mxu0 %v98
    %100 = vmatprep.subr.mxu0 0.0
    %v101 = vand.u32 %v24, 4294901760
    %102 = vmatpush1.msra.mxu0 %v101
    %103 = vmatprep.subr.mxu0 0.0
    %v104 = vand.u32 %v23, 4294901760
    %105 = vmatpush1.msra.mxu0 %v104
    %106 = vmatprep.subr.mxu0 0.0
    %v107 = vand.u32 %v22, 4294901760
    %108 = vmatpush1.msra.mxu0 %v107
    %109 = vmatprep.subr.mxu0 0.0
    %v110 = vand.u32 %v21, 4294901760
    %111 = vmatpush1.msra.mxu0 %v110
    %112 = vmatprep.subr.mxu0 0.0
    %v113 = vand.u32 %v20, 4294901760
    %114 = vmatpush1.msra.mxu0 %v113
    %115 = vmatprep.subr.mxu0 0.0
    %v116 = vand.u32 %v19, 4294901760
    %117 = vmatpush1.msra.mxu0 %v116
    %118 = vmatprep.subr.mxu0 0.0
    %v119 = vand.u32 %v18, 4294901760
    %120 = vmatpush1.msra.mxu0 %v119
    %121 = vmatprep.subr.mxu0 0.0
    %v122 = vand.u32 %v49, 4294901760
    %123 = vmatpush2.msra.mxu0 %v122
    %124 = vmatprep.subr.mxu0 0.0
    %v125 = vand.u32 %v48, 4294901760
    %126 = vmatpush2.msra.mxu0 %v125
    %127 = vmatprep.subr.mxu0 0.0
    %v128 = vand.u32 %v47, 4294901760
    %129 = vmatpush2.msra.mxu0 %v128
    %130 = vmatprep.subr.mxu0 0.0
    %v131 = vand.u32 %v46, 4294901760
    %132 = vmatpush2.msra.mxu0 %v131
    %133 = vmatprep.subr.mxu0 0.0
    %v134 = vand.u32 %v45, 4294901760
    %135 = vmatpush2.msra.mxu0 %v134
    %136 = vmatprep.subr.mxu0 0.0
    %v137 = vand.u32 %v44, 4294901760
    %138 = vmatpush2.msra.mxu0 %v137
    %139 = vmatprep.subr.mxu0 0.0
    %v140 = vand.u32 %v43, 4294901760
    %141 = vmatpush2.msra.mxu0 %v140
    %142 = vmatprep.subr.mxu0 0.0
    %v143 = vand.u32 %v42, 4294901760
    %144 = vmatpush2.msra.mxu0 %v143
    %145 = vmatprep.subr.mxu0 0.0
    %v146 = vand.u32 %v41, 4294901760
    %147 = vmatpush2.msra.mxu0 %v146
    %148 = vmatprep.subr.mxu0 0.0
    %v149 = vand.u32 %v40, 4294901760
    %150 = vmatpush2.msra.mxu0 %v149
    %151 = vmatprep.subr.mxu0 0.0
    %v152 = vand.u32 %v39, 4294901760
    %153 = vmatpush2.msra.mxu0 %v152
    %154 = vmatprep.subr.mxu0 0.0
    %v155 = vand.u32 %v38, 4294901760
    %156 = vmatpush2.msra.mxu0 %v155
    %157 = vmatprep.subr.mxu0 0.0
    %v158 = vand.u32 %v37, 4294901760
    %159 = vmatpush2.msra.mxu0 %v158
    %160 = vmatprep.subr.mxu0 0.0
    %v161 = vand.u32 %v36, 4294901760
    %162 = vmatpush2.msra.mxu0 %v161
    %163 = vmatprep.subr.mxu0 0.0
    %v164 = vand.u32 %v35, 4294901760
    %165 = vmatpush2.msra.mxu0 %v164
    %166 = vmatprep.subr.mxu0 0.0
    %v167 = vand.u32 %v34, 4294901760
    %168 = vmatpush2.msra.mxu0 %v167
    %v169 = vand.u32 %v16, 4294901760
    %v170 = vsub.f32 %v16, %v169
    %v171 = vand.u32 %v170, 4294901760
    %v172 = vsub.f32 %v170, %v171
    %v173 = vand.u32 %v172, 4294901760
    %174 = vmatprep.mubr.f32.mxu0 %v173
    %v175 = vand.u32 %v15, 4294901760
    %v176 = vsub.f32 %v15, %v175
    %v177 = vand.u32 %v176, 4294901760
    %v178 = vsub.f32 %v176, %v177
    %v179 = vand.u32 %v178, 4294901760
    %180 = vmatmul.mubr.f32.gmra.mxu0 %v179
    %v181 = vpop.f32.mrf.mxu0
    %v182 = vadd.f32 %v71, %v181
    %v183 = vpop.f32.mrf.mxu0
    %184 = vdwg.mxu0
    %185 = vmatprep.subr.mxu0 0.0
    %v186 = vand.u32 %v33, 4294901760
    %v187 = vsub.f32 %v33, %v186
    %v188 = vand.u32 %v187, 4294901760
    %v189 = vsub.f32 %v187, %v188
    %v190 = vand.u32 %v189, 4294901760
    %191 = vmatpush1.msra.mxu0 %v190
    %192 = vmatprep.subr.mxu0 0.0
    %v193 = vand.u32 %v32, 4294901760
    %v194 = vsub.f32 %v32, %v193
    %v195 = vand.u32 %v194, 4294901760
    %v196 = vsub.f32 %v194, %v195
    %v197 = vand.u32 %v196, 4294901760
    %198 = vmatpush1.msra.mxu0 %v197
    %199 = vmatprep.subr.mxu0 0.0
    %v200 = vand.u32 %v31, 4294901760
    %v201 = vsub.f32 %v31, %v200
    %v202 = vand.u32 %v201, 4294901760
    %v203 = vsub.f32 %v201, %v202
    %v204 = vand.u32 %v203, 4294901760
    %205 = vmatpush1.msra.mxu0 %v204
    %206 = vmatprep.subr.mxu0 0.0
    %v207 = vand.u32 %v30, 4294901760
    %v208 = vsub.f32 %v30, %v207
    %v209 = vand.u32 %v208, 4294901760
    %v210 = vsub.f32 %v208, %v209
    %v211 = vand.u32 %v210, 4294901760
    %212 = vmatpush1.msra.mxu0 %v211
    %213 = vmatprep.subr.mxu0 0.0
    %v214 = vand.u32 %v29, 4294901760
    %v215 = vsub.f32 %v29, %v214
    %v216 = vand.u32 %v215, 4294901760
    %v217 = vsub.f32 %v215, %v216
    %v218 = vand.u32 %v217, 4294901760
    %219 = vmatpush1.msra.mxu0 %v218
    %220 = vmatprep.subr.mxu0 0.0
    %v221 = vand.u32 %v28, 4294901760
    %v222 = vsub.f32 %v28, %v221
    %v223 = vand.u32 %v222, 4294901760
    %v224 = vsub.f32 %v222, %v223
    %v225 = vand.u32 %v224, 4294901760
    %226 = vmatpush1.msra.mxu0 %v225
    %227 = vmatprep.subr.mxu0 0.0
    %v228 = vand.u32 %v27, 4294901760
    %v229 = vsub.f32 %v27, %v228
    %v230 = vand.u32 %v229, 4294901760
    %v231 = vsub.f32 %v229, %v230
    %v232 = vand.u32 %v231, 4294901760
    %233 = vmatpush1.msra.mxu0 %v232
    %234 = vmatprep.subr.mxu0 0.0
    %v235 = vand.u32 %v26, 4294901760
    %v236 = vsub.f32 %v26, %v235
    %v237 = vand.u32 %v236, 4294901760
    %v238 = vsub.f32 %v236, %v237
    %v239 = vand.u32 %v238, 4294901760
    %240 = vmatpush1.msra.mxu0 %v239
    %241 = vmatprep.subr.mxu0 0.0
    %v242 = vand.u32 %v25, 4294901760
    %v243 = vsub.f32 %v25, %v242
    %v244 = vand.u32 %v243, 4294901760
    %v245 = vsub.f32 %v243, %v244
    %v246 = vand.u32 %v245, 4294901760
    %247 = vmatpush1.msra.mxu0 %v246
    %248 = vmatprep.subr.mxu0 0.0
    %v249 = vand.u32 %v24, 4294901760
    %v250 = vsub.f32 %v24, %v249
    %v251 = vand.u32 %v250, 4294901760
    %v252 = vsub.f32 %v250, %v251
    %v253 = vand.u32 %v252, 4294901760
    %254 = vmatpush1.msra.mxu0 %v253
    %255 = vmatprep.subr.mxu0 0.0
    %v256 = vand.u32 %v23, 4294901760
    %v257 = vsub.f32 %v23, %v256
    %v258 = vand.u32 %v257, 4294901760
    %v259 = vsub.f32 %v257, %v258
    %v260 = vand.u32 %v259, 4294901760
    %261 = vmatpush1.msra.mxu0 %v260
    %262 = vmatprep.subr.mxu0 0.0
    %v263 = vand.u32 %v22, 4294901760
    %v264 = vsub.f32 %v22, %v263
    %v265 = vand.u32 %v264, 4294901760
    %v266 = vsub.f32 %v264, %v265
    %v267 = vand.u32 %v266, 4294901760
    %268 = vmatpush1.msra.mxu0 %v267
    %269 = vmatprep.subr.mxu0 0.0
    %v270 = vand.u32 %v21, 4294901760
    %v271 = vsub.f32 %v21, %v270
    %v272 = vand.u32 %v271, 4294901760
    %v273 = vsub.f32 %v271, %v272
    %v274 = vand.u32 %v273, 4294901760
    %275 = vmatpush1.msra.mxu0 %v274
    %276 = vmatprep.subr.mxu0 0.0
    %v277 = vand.u32 %v20, 4294901760
    %v278 = vsub.f32 %v20, %v277
    %v279 = vand.u32 %v278, 4294901760
    %v280 = vsub.f32 %v278, %v279
    %v281 = vand.u32 %v280, 4294901760
    %282 = vmatpush1.msra.mxu0 %v281
    %283 = vmatprep.subr.mxu0 0.0
    %v284 = vand.u32 %v19, 4294901760
    %v285 = vsub.f32 %v19, %v284
    %v286 = vand.u32 %v285, 4294901760
    %v287 = vsub.f32 %v285, %v286
    %v288 = vand.u32 %v287, 4294901760
    %289 = vmatpush1.msra.mxu0 %v288
    %290 = vmatprep.subr.mxu0 0.0
    %v291 = vand.u32 %v18, 4294901760
    %v292 = vsub.f32 %v18, %v291
    %v293 = vand.u32 %v292, 4294901760
    %v294 = vsub.f32 %v292, %v293
    %v295 = vand.u32 %v294, 4294901760
    %296 = vmatpush1.msra.mxu0 %v295
    %297 = vmatprep.subr.mxu0 0.0
    %v298 = vand.u32 %v49, 4294901760
    %v299 = vsub.f32 %v49, %v298
    %v300 = vand.u32 %v299, 4294901760
    %v301 = vsub.f32 %v299, %v300
    %v302 = vand.u32 %v301, 4294901760
    %303 = vmatpush2.msra.mxu0 %v302
    %304 = vmatprep.subr.mxu0 0.0
    %v305 = vand.u32 %v48, 4294901760
    %v306 = vsub.f32 %v48, %v305
    %v307 = vand.u32 %v306, 4294901760
    %v308 = vsub.f32 %v306, %v307
    %v309 = vand.u32 %v308, 4294901760
    %310 = vmatpush2.msra.mxu0 %v309
    %311 = vmatprep.subr.mxu0 0.0
    %v312 = vand.u32 %v47, 4294901760
    %v313 = vsub.f32 %v47, %v312
    %v314 = vand.u32 %v313, 4294901760
    %v315 = vsub.f32 %v313, %v314
    %v316 = vand.u32 %v315, 4294901760
    %317 = vmatpush2.msra.mxu0 %v316
    %318 = vmatprep.subr.mxu0 0.0
    %v319 = vand.u32 %v46, 4294901760
    %v320 = vsub.f32 %v46, %v319
    %v321 = vand.u32 %v320, 4294901760
    %v322 = vsub.f32 %v320, %v321
    %v323 = vand.u32 %v322, 4294901760
    %324 = vmatpush2.msra.mxu0 %v323
    %325 = vmatprep.subr.mxu0 0.0
    %v326 = vand.u32 %v45, 4294901760
    %v327 = vsub.f32 %v45, %v326
    %v328 = vand.u32 %v327, 4294901760
    %v329 = vsub.f32 %v327, %v328
    %v330 = vand.u32 %v329, 4294901760
    %331 = vmatpush2.msra.mxu0 %v330
    %332 = vmatprep.subr.mxu0 0.0
    %v333 = vand.u32 %v44, 4294901760
    %v334 = vsub.f32 %v44, %v333
    %v335 = vand.u32 %v334, 4294901760
    %v336 = vsub.f32 %v334, %v335
    %v337 = vand.u32 %v336, 4294901760
    %338 = vmatpush2.msra.mxu0 %v337
    %339 = vmatprep.subr.mxu0 0.0
    %v340 = vand.u32 %v43, 4294901760
    %v341 = vsub.f32 %v43, %v340
    %v342 = vand.u32 %v341, 4294901760
    %v343 = vsub.f32 %v341, %v342
    %v344 = vand.u32 %v343, 4294901760
    %345 = vmatpush2.msra.mxu0 %v344
    %346 = vmatprep.subr.mxu0 0.0
    %v347 = vand.u32 %v42, 4294901760
    %v348 = vsub.f32 %v42, %v347
    %v349 = vand.u32 %v348, 4294901760
    %v350 = vsub.f32 %v348, %v349
    %v351 = vand.u32 %v350, 4294901760
    %352 = vmatpush2.msra.mxu0 %v351
    %353 = vmatprep.subr.mxu0 0.0
    %v354 = vand.u32 %v41, 4294901760
    %v355 = vsub.f32 %v41, %v354
    %v356 = vand.u32 %v355, 4294901760
    %v357 = vsub.f32 %v355, %v356
    %v358 = vand.u32 %v357, 4294901760
    %359 = vmatpush2.msra.mxu0 %v358
    %360 = vmatprep.subr.mxu0 0.0
    %v361 = vand.u32 %v40, 4294901760
    %v362 = vsub.f32 %v40, %v361
    %v363 = vand.u32 %v362, 4294901760
    %v364 = vsub.f32 %v362, %v363
    %v365 = vand.u32 %v364, 4294901760
    %366 = vmatpush2.msra.mxu0 %v365
    %367 = vmatprep.subr.mxu0 0.0
    %v368 = vand.u32 %v39, 4294901760
    %v369 = vsub.f32 %v39, %v368
    %v370 = vand.u32 %v369, 4294901760
    %v371 = vsub.f32 %v369, %v370
    %v372 = vand.u32 %v371, 4294901760
    %373 = vmatpush2.msra.mxu0 %v372
    %374 = vmatprep.subr.mxu0 0.0
    %v375 = vand.u32 %v38, 4294901760
    %v376 = vsub.f32 %v38, %v375
    %v377 = vand.u32 %v376, 4294901760
    %v378 = vsub.f32 %v376, %v377
    %v379 = vand.u32 %v378, 4294901760
    %380 = vmatpush2.msra.mxu0 %v379
    %381 = vmatprep.subr.mxu0 0.0
    %v382 = vand.u32 %v37, 4294901760
    %v383 = vsub.f32 %v37, %v382
    %v384 = vand.u32 %v383, 4294901760
    %v385 = vsub.f32 %v383, %v384
    %v386 = vand.u32 %v385, 4294901760
    %387 = vmatpush2.msra.mxu0 %v386
    %388 = vmatprep.subr.mxu0 0.0
    %v389 = vand.u32 %v36, 4294901760
    %v390 = vsub.f32 %v36, %v389
    %v391 = vand.u32 %v390, 4294901760
    %v392 = vsub.f32 %v390, %v391
    %v393 = vand.u32 %v392, 4294901760
    %394 = vmatpush2.msra.mxu0 %v393
    %395 = vmatprep.subr.mxu0 0.0
    %v396 = vand.u32 %v35, 4294901760
    %v397 = vsub.f32 %v35, %v396
    %v398 = vand.u32 %v397, 4294901760
    %v399 = vsub.f32 %v397, %v398
    %v400 = vand.u32 %v399, 4294901760
    %401 = vmatpush2.msra.mxu0 %v400
    %402 = vmatprep.subr.mxu0 0.0
    %v403 = vand.u32 %v34, 4294901760
    %v404 = vsub.f32 %v34, %v403
    %v405 = vand.u32 %v404, 4294901760
    %v406 = vsub.f32 %v404, %v405
    %v407 = vand.u32 %v406, 4294901760
    %408 = vmatpush2.msra.mxu0 %v407
    %v409 = vand.u32 %v16, 4294901760
    %410 = vmatprep.mubr.f32.mxu0 %v409
    %v411 = vand.u32 %v15, 4294901760
    %412 = vmatmul.mubr.f32.gmra.mxu0 %v411
    %v413 = vpop.f32.mrf.mxu0
    %v414 = vadd.f32 %v182, %v413
    %v415 = vpop.f32.mrf.mxu0
    %416 = vdwg.mxu0
    %417 = vmatprep.subr.mxu0 0.0
    %v418 = vand.u32 %v33, 4294901760
    %v419 = vsub.f32 %v33, %v418
    %420 = vmatpush1.msra.mxu0 %v419
    %421 = vmatprep.subr.mxu0 0.0
    %v422 = vand.u32 %v32, 4294901760
    %v423 = vsub.f32 %v32, %v422
    %424 = vmatpush1.msra.mxu0 %v423
    %425 = vmatprep.subr.mxu0 0.0
    %v426 = vand.u32 %v31, 4294901760
    %v427 = vsub.f32 %v31, %v426
    %428 = vmatpush1.msra.mxu0 %v427
    %429 = vmatprep.subr.mxu0 0.0
    %v430 = vand.u32 %v30, 4294901760
    %v431 = vsub.f32 %v30, %v430
    %432 = vmatpush1.msra.mxu0 %v431
    %433 = vmatprep.subr.mxu0 0.0
    %v434 = vand.u32 %v29, 4294901760
    %v435 = vsub.f32 %v29, %v434
    %436 = vmatpush1.msra.mxu0 %v435
    %437 = vmatprep.subr.mxu0 0.0
    %v438 = vand.u32 %v28, 4294901760
    %v439 = vsub.f32 %v28, %v438
    %440 = vmatpush1.msra.mxu0 %v439
    %441 = vmatprep.subr.mxu0 0.0
    %v442 = vand.u32 %v27, 4294901760
    %v443 = vsub.f32 %v27, %v442
    %444 = vmatpush1.msra.mxu0 %v443
    %445 = vmatprep.subr.mxu0 0.0
    %v446 = vand.u32 %v26, 4294901760
    %v447 = vsub.f32 %v26, %v446
    %448 = vmatpush1.msra.mxu0 %v447
    %449 = vmatprep.subr.mxu0 0.0
    %v450 = vand.u32 %v25, 4294901760
    %v451 = vsub.f32 %v25, %v450
    %452 = vmatpush1.msra.mxu0 %v451
    %453 = vmatprep.subr.mxu0 0.0
    %v454 = vand.u32 %v24, 4294901760
    %v455 = vsub.f32 %v24, %v454
    %456 = vmatpush1.msra.mxu0 %v455
    %457 = vmatprep.subr.mxu0 0.0
    %v458 = vand.u32 %v23, 4294901760
    %v459 = vsub.f32 %v23, %v458
    %460 = vmatpush1.msra.mxu0 %v459
    %461 = vmatprep.subr.mxu0 0.0
    %v462 = vand.u32 %v22, 4294901760
    %v463 = vsub.f32 %v22, %v462
    %464 = vmatpush1.msra.mxu0 %v463
    %465 = vmatprep.subr.mxu0 0.0
    %v466 = vand.u32 %v21, 4294901760
    %v467 = vsub.f32 %v21, %v466
    %468 = vmatpush1.msra.mxu0 %v467
    %469 = vmatprep.subr.mxu0 0.0
    %v470 = vand.u32 %v20, 4294901760
    %v471 = vsub.f32 %v20, %v470
    %472 = vmatpush1.msra.mxu0 %v471
    %473 = vmatprep.subr.mxu0 0.0
    %v474 = vand.u32 %v19, 4294901760
    %v475 = vsub.f32 %v19, %v474
    %476 = vmatpush1.msra.mxu0 %v475
    %477 = vmatprep.subr.mxu0 0.0
    %v478 = vand.u32 %v18, 4294901760
    %v479 = vsub.f32 %v18, %v478
    %480 = vmatpush1.msra.mxu0 %v479
    %481 = vmatprep.subr.mxu0 0.0
    %v482 = vand.u32 %v49, 4294901760
    %v483 = vsub.f32 %v49, %v482
    %484 = vmatpush2.msra.mxu0 %v483
    %485 = vmatprep.subr.mxu0 0.0
    %v486 = vand.u32 %v48, 4294901760
    %v487 = vsub.f32 %v48, %v486
    %488 = vmatpush2.msra.mxu0 %v487
    %489 = vmatprep.subr.mxu0 0.0
    %v490 = vand.u32 %v47, 4294901760
    %v491 = vsub.f32 %v47, %v490
    %492 = vmatpush2.msra.mxu0 %v491
    %493 = vmatprep.subr.mxu0 0.0
    %v494 = vand.u32 %v46, 4294901760
    %v495 = vsub.f32 %v46, %v494
    %496 = vmatpush2.msra.mxu0 %v495
    %497 = vmatprep.subr.mxu0 0.0
    %v498 = vand.u32 %v45, 4294901760
    %v499 = vsub.f32 %v45, %v498
    %500 = vmatpush2.msra.mxu0 %v499
    %501 = vmatprep.subr.mxu0 0.0
    %v502 = vand.u32 %v44, 4294901760
    %v503 = vsub.f32 %v44, %v502
    %504 = vmatpush2.msra.mxu0 %v503
    %505 = vmatprep.subr.mxu0 0.0
    %v506 = vand.u32 %v43, 4294901760
    %v507 = vsub.f32 %v43, %v506
    %508 = vmatpush2.msra.mxu0 %v507
    %509 = vmatprep.subr.mxu0 0.0
    %v510 = vand.u32 %v42, 4294901760
    %v511 = vsub.f32 %v42, %v510
    %512 = vmatpush2.msra.mxu0 %v511
    %513 = vmatprep.subr.mxu0 0.0
    %v514 = vand.u32 %v41, 4294901760
    %v515 = vsub.f32 %v41, %v514
    %516 = vmatpush2.msra.mxu0 %v515
    %517 = vmatprep.subr.mxu0 0.0
    %v518 = vand.u32 %v40, 4294901760
    %v519 = vsub.f32 %v40, %v518
    %520 = vmatpush2.msra.mxu0 %v519
    %521 = vmatprep.subr.mxu0 0.0
    %v522 = vand.u32 %v39, 4294901760
    %v523 = vsub.f32 %v39, %v522
    %524 = vmatpush2.msra.mxu0 %v523
    %525 = vmatprep.subr.mxu0 0.0
    %v526 = vand.u32 %v38, 4294901760
    %v527 = vsub.f32 %v38, %v526
    %528 = vmatpush2.msra.mxu0 %v527
    %529 = vmatprep.subr.mxu0 0.0
    %v530 = vand.u32 %v37, 4294901760
    %v531 = vsub.f32 %v37, %v530
    %532 = vmatpush2.msra.mxu0 %v531
    %533 = vmatprep.subr.mxu0 0.0
    %v534 = vand.u32 %v36, 4294901760
    %v535 = vsub.f32 %v36, %v534
    %536 = vmatpush2.msra.mxu0 %v535
    %537 = vmatprep.subr.mxu0 0.0
    %v538 = vand.u32 %v35, 4294901760
    %v539 = vsub.f32 %v35, %v538
    %540 = vmatpush2.msra.mxu0 %v539
    %541 = vmatprep.subr.mxu0 0.0
    %v542 = vand.u32 %v34, 4294901760
    %v543 = vsub.f32 %v34, %v542
    %544 = vmatpush2.msra.mxu0 %v543
    %v545 = vand.u32 %v16, 4294901760
    %v546 = vsub.f32 %v16, %v545
    %547 = vmatprep.mubr.f32.mxu0 %v546
    %v548 = vand.u32 %v15, 4294901760
    %v549 = vsub.f32 %v15, %v548
    %550 = vmatmul.mubr.f32.gmra.mxu0 %v549
    %v551 = vpop.f32.mrf.mxu0
    %v552 = vadd.f32 %v414, %v551
    %v553 = vpop.f32.mrf.mxu0
    %554 = vdwg.mxu0
    %555 = vmatprep.subr.mxu0 0.0
    %v556 = vand.u32 %v33, 4294901760
    %557 = vmatpush1.msra.mxu0 %v556
    %558 = vmatprep.subr.mxu0 0.0
    %v559 = vand.u32 %v32, 4294901760
    %560 = vmatpush1.msra.mxu0 %v559
    %561 = vmatprep.subr.mxu0 0.0
    %v562 = vand.u32 %v31, 4294901760
    %563 = vmatpush1.msra.mxu0 %v562
    %564 = vmatprep.subr.mxu0 0.0
    %v565 = vand.u32 %v30, 4294901760
    %566 = vmatpush1.msra.mxu0 %v565
    %567 = vmatprep.subr.mxu0 0.0
    %v568 = vand.u32 %v29, 4294901760
    %569 = vmatpush1.msra.mxu0 %v568
    %570 = vmatprep.subr.mxu0 0.0
    %v571 = vand.u32 %v28, 4294901760
    %572 = vmatpush1.msra.mxu0 %v571
    %573 = vmatprep.subr.mxu0 0.0
    %v574 = vand.u32 %v27, 4294901760
    %575 = vmatpush1.msra.mxu0 %v574
    %576 = vmatprep.subr.mxu0 0.0
    %v577 = vand.u32 %v26, 4294901760
    %578 = vmatpush1.msra.mxu0 %v577
    %579 = vmatprep.subr.mxu0 0.0
    %v580 = vand.u32 %v25, 4294901760
    %581 = vmatpush1.msra.mxu0 %v580
    %582 = vmatprep.subr.mxu0 0.0
    %v583 = vand.u32 %v24, 4294901760
    %584 = vmatpush1.msra.mxu0 %v583
    %585 = vmatprep.subr.mxu0 0.0
    %v586 = vand.u32 %v23, 4294901760
    %587 = vmatpush1.msra.mxu0 %v586
    %588 = vmatprep.subr.mxu0 0.0
    %v589 = vand.u32 %v22, 4294901760
    %590 = vmatpush1.msra.mxu0 %v589
    %591 = vmatprep.subr.mxu0 0.0
    %v592 = vand.u32 %v21, 4294901760
    %593 = vmatpush1.msra.mxu0 %v592
    %594 = vmatprep.subr.mxu0 0.0
    %v595 = vand.u32 %v20, 4294901760
    %596 = vmatpush1.msra.mxu0 %v595
    %597 = vmatprep.subr.mxu0 0.0
    %v598 = vand.u32 %v19, 4294901760
    %599 = vmatpush1.msra.mxu0 %v598
    %600 = vmatprep.subr.mxu0 0.0
    %v601 = vand.u32 %v18, 4294901760
    %602 = vmatpush1.msra.mxu0 %v601
    %603 = vmatprep.subr.mxu0 0.0
    %v604 = vand.u32 %v49, 4294901760
    %605 = vmatpush2.msra.mxu0 %v604
    %606 = vmatprep.subr.mxu0 0.0
    %v607 = vand.u32 %v48, 4294901760
    %608 = vmatpush2.msra.mxu0 %v607
    %609 = vmatprep.subr.mxu0 0.0
    %v610 = vand.u32 %v47, 4294901760
    %611 = vmatpush2.msra.mxu0 %v610
    %612 = vmatprep.subr.mxu0 0.0
    %v613 = vand.u32 %v46, 4294901760
    %614 = vmatpush2.msra.mxu0 %v613
    %615 = vmatprep.subr.mxu0 0.0
    %v616 = vand.u32 %v45, 4294901760
    %617 = vmatpush2.msra.mxu0 %v616
    %618 = vmatprep.subr.mxu0 0.0
    %v619 = vand.u32 %v44, 4294901760
    %620 = vmatpush2.msra.mxu0 %v619
    %621 = vmatprep.subr.mxu0 0.0
    %v622 = vand.u32 %v43, 4294901760
    %623 = vmatpush2.msra.mxu0 %v622
    %624 = vmatprep.subr.mxu0 0.0
    %v625 = vand.u32 %v42, 4294901760
    %626 = vmatpush2.msra.mxu0 %v625
    %627 = vmatprep.subr.mxu0 0.0
    %v628 = vand.u32 %v41, 4294901760
    %629 = vmatpush2.msra.mxu0 %v628
    %630 = vmatprep.subr.mxu0 0.0
    %v631 = vand.u32 %v40, 4294901760
    %632 = vmatpush2.msra.mxu0 %v631
    %633 = vmatprep.subr.mxu0 0.0
    %v634 = vand.u32 %v39, 4294901760
    %635 = vmatpush2.msra.mxu0 %v634
    %636 = vmatprep.subr.mxu0 0.0
    %v637 = vand.u32 %v38, 4294901760
    %638 = vmatpush2.msra.mxu0 %v637
    %639 = vmatprep.subr.mxu0 0.0
    %v640 = vand.u32 %v37, 4294901760
    %641 = vmatpush2.msra.mxu0 %v640
    %642 = vmatprep.subr.mxu0 0.0
    %v643 = vand.u32 %v36, 4294901760
    %644 = vmatpush2.msra.mxu0 %v643
    %645 = vmatprep.subr.mxu0 0.0
    %v646 = vand.u32 %v35, 4294901760
    %647 = vmatpush2.msra.mxu0 %v646
    %648 = vmatprep.subr.mxu0 0.0
    %v649 = vand.u32 %v34, 4294901760
    %650 = vmatpush2.msra.mxu0 %v649
    %v651 = vand.u32 %v16, 4294901760
    %v652 = vsub.f32 %v16, %v651
    %v653 = vand.u32 %v652, 4294901760
    %654 = vmatprep.mubr.f32.mxu0 %v653
    %v655 = vand.u32 %v15, 4294901760
    %v656 = vsub.f32 %v15, %v655
    %v657 = vand.u32 %v656, 4294901760
    %658 = vmatmul.mubr.f32.gmra.mxu0 %v657
    %v659 = vpop.f32.mrf.mxu0
    %v660 = vadd.f32 %v552, %v659
    %v661 = vpop.f32.mrf.mxu0
    %662 = vdwg.mxu0
    %663 = vmatprep.subr.mxu0 0.0
    %v664 = vand.u32 %v33, 4294901760
    %v665 = vsub.f32 %v33, %v664
    %v666 = vand.u32 %v665, 4294901760
    %667 = vmatpush1.msra.mxu0 %v666
    %668 = vmatprep.subr.mxu0 0.0
    %v669 = vand.u32 %v32, 4294901760
    %v670 = vsub.f32 %v32, %v669
    %v671 = vand.u32 %v670, 4294901760
    %672 = vmatpush1.msra.mxu0 %v671
    %673 = vmatprep.subr.mxu0 0.0
    %v674 = vand.u32 %v31, 4294901760
    %v675 = vsub.f32 %v31, %v674
    %v676 = vand.u32 %v675, 4294901760
    %677 = vmatpush1.msra.mxu0 %v676
    %678 = vmatprep.subr.mxu0 0.0
    %v679 = vand.u32 %v30, 4294901760
    %v680 = vsub.f32 %v30, %v679
    %v681 = vand.u32 %v680, 4294901760
    %682 = vmatpush1.msra.mxu0 %v681
    %683 = vmatprep.subr.mxu0 0.0
    %v684 = vand.u32 %v29, 4294901760
    %v685 = vsub.f32 %v29, %v684
    %v686 = vand.u32 %v685, 4294901760
    %687 = vmatpush1.msra.mxu0 %v686
    %688 = vmatprep.subr.mxu0 0.0
    %v689 = vand.u32 %v28, 4294901760
    %v690 = vsub.f32 %v28, %v689
    %v691 = vand.u32 %v690, 4294901760
    %692 = vmatpush1.msra.mxu0 %v691
    %693 = vmatprep.subr.mxu0 0.0
    %v694 = vand.u32 %v27, 4294901760
    %v695 = vsub.f32 %v27, %v694
    %v696 = vand.u32 %v695, 4294901760
    %697 = vmatpush1.msra.mxu0 %v696
    %698 = vmatprep.subr.mxu0 0.0
    %v699 = vand.u32 %v26, 4294901760
    %v700 = vsub.f32 %v26, %v699
    %v701 = vand.u32 %v700, 4294901760
    %702 = vmatpush1.msra.mxu0 %v701
    %703 = vmatprep.subr.mxu0 0.0
    %v704 = vand.u32 %v25, 4294901760
    %v705 = vsub.f32 %v25, %v704
    %v706 = vand.u32 %v705, 4294901760
    %707 = vmatpush1.msra.mxu0 %v706
    %708 = vmatprep.subr.mxu0 0.0
    %v709 = vand.u32 %v24, 4294901760
    %v710 = vsub.f32 %v24, %v709
    %v711 = vand.u32 %v710, 4294901760
    %712 = vmatpush1.msra.mxu0 %v711
    %713 = vmatprep.subr.mxu0 0.0
    %v714 = vand.u32 %v23, 4294901760
    %v715 = vsub.f32 %v23, %v714
    %v716 = vand.u32 %v715, 4294901760
    %717 = vmatpush1.msra.mxu0 %v716
    %718 = vmatprep.subr.mxu0 0.0
    %v719 = vand.u32 %v22, 4294901760
    %v720 = vsub.f32 %v22, %v719
    %v721 = vand.u32 %v720, 4294901760
    %722 = vmatpush1.msra.mxu0 %v721
    %723 = vmatprep.subr.mxu0 0.0
    %v724 = vand.u32 %v21, 4294901760
    %v725 = vsub.f32 %v21, %v724
    %v726 = vand.u32 %v725, 4294901760
    %727 = vmatpush1.msra.mxu0 %v726
    %728 = vmatprep.subr.mxu0 0.0
    %v729 = vand.u32 %v20, 4294901760
    %v730 = vsub.f32 %v20, %v729
    %v731 = vand.u32 %v730, 4294901760
    %732 = vmatpush1.msra.mxu0 %v731
    %733 = vmatprep.subr.mxu0 0.0
    %v734 = vand.u32 %v19, 4294901760
    %v735 = vsub.f32 %v19, %v734
    %v736 = vand.u32 %v735, 4294901760
    %737 = vmatpush1.msra.mxu0 %v736
    %738 = vmatprep.subr.mxu0 0.0
    %v739 = vand.u32 %v18, 4294901760
    %v740 = vsub.f32 %v18, %v739
    %v741 = vand.u32 %v740, 4294901760
    %742 = vmatpush1.msra.mxu0 %v741
    %743 = vmatprep.subr.mxu0 0.0
    %v744 = vand.u32 %v49, 4294901760
    %v745 = vsub.f32 %v49, %v744
    %v746 = vand.u32 %v745, 4294901760
    %747 = vmatpush2.msra.mxu0 %v746
    %748 = vmatprep.subr.mxu0 0.0
    %v749 = vand.u32 %v48, 4294901760
    %v750 = vsub.f32 %v48, %v749
    %v751 = vand.u32 %v750, 4294901760
    %752 = vmatpush2.msra.mxu0 %v751
    %753 = vmatprep.subr.mxu0 0.0
    %v754 = vand.u32 %v47, 4294901760
    %v755 = vsub.f32 %v47, %v754
    %v756 = vand.u32 %v755, 4294901760
    %757 = vmatpush2.msra.mxu0 %v756
    %758 = vmatprep.subr.mxu0 0.0
    %v759 = vand.u32 %v46, 4294901760
    %v760 = vsub.f32 %v46, %v759
    %v761 = vand.u32 %v760, 4294901760
    %762 = vmatpush2.msra.mxu0 %v761
    %763 = vmatprep.subr.mxu0 0.0
    %v764 = vand.u32 %v45, 4294901760
    %v765 = vsub.f32 %v45, %v764
    %v766 = vand.u32 %v765, 4294901760
    %767 = vmatpush2.msra.mxu0 %v766
    %768 = vmatprep.subr.mxu0 0.0
    %v769 = vand.u32 %v44, 4294901760
    %v770 = vsub.f32 %v44, %v769
    %v771 = vand.u32 %v770, 4294901760
    %772 = vmatpush2.msra.mxu0 %v771
    %773 = vmatprep.subr.mxu0 0.0
    %v774 = vand.u32 %v43, 4294901760
    %v775 = vsub.f32 %v43, %v774
    %v776 = vand.u32 %v775, 4294901760
    %777 = vmatpush2.msra.mxu0 %v776
    %778 = vmatprep.subr.mxu0 0.0
    %v779 = vand.u32 %v42, 4294901760
    %v780 = vsub.f32 %v42, %v779
    %v781 = vand.u32 %v780, 4294901760
    %782 = vmatpush2.msra.mxu0 %v781
    %783 = vmatprep.subr.mxu0 0.0
    %v784 = vand.u32 %v41, 4294901760
    %v785 = vsub.f32 %v41, %v784
    %v786 = vand.u32 %v785, 4294901760
    %787 = vmatpush2.msra.mxu0 %v786
    %788 = vmatprep.subr.mxu0 0.0
    %v789 = vand.u32 %v40, 4294901760
    %v790 = vsub.f32 %v40, %v789
    %v791 = vand.u32 %v790, 4294901760
    %792 = vmatpush2.msra.mxu0 %v791
    %793 = vmatprep.subr.mxu0 0.0
    %v794 = vand.u32 %v39, 4294901760
    %v795 = vsub.f32 %v39, %v794
    %v796 = vand.u32 %v795, 4294901760
    %797 = vmatpush2.msra.mxu0 %v796
    %798 = vmatprep.subr.mxu0 0.0
    %v799 = vand.u32 %v38, 4294901760
    %v800 = vsub.f32 %v38, %v799
    %v801 = vand.u32 %v800, 4294901760
    %802 = vmatpush2.msra.mxu0 %v801
    %803 = vmatprep.subr.mxu0 0.0
    %v804 = vand.u32 %v37, 4294901760
    %v805 = vsub.f32 %v37, %v804
    %v806 = vand.u32 %v805, 4294901760
    %807 = vmatpush2.msra.mxu0 %v806
    %808 = vmatprep.subr.mxu0 0.0
    %v809 = vand.u32 %v36, 4294901760
    %v810 = vsub.f32 %v36, %v809
    %v811 = vand.u32 %v810, 4294901760
    %812 = vmatpush2.msra.mxu0 %v811
    %813 = vmatprep.subr.mxu0 0.0
    %v814 = vand.u32 %v35, 4294901760
    %v815 = vsub.f32 %v35, %v814
    %v816 = vand.u32 %v815, 4294901760
    %817 = vmatpush2.msra.mxu0 %v816
    %818 = vmatprep.subr.mxu0 0.0
    %v819 = vand.u32 %v34, 4294901760
    %v820 = vsub.f32 %v34, %v819
    %v821 = vand.u32 %v820, 4294901760
    %822 = vmatpush2.msra.mxu0 %v821
    %v823 = vand.u32 %v16, 4294901760
    %824 = vmatprep.mubr.f32.mxu0 %v823
    %v825 = vand.u32 %v15, 4294901760
    %826 = vmatmul.mubr.f32.gmra.mxu0 %v825
    %v827 = vpop.f32.mrf.mxu0
    %v828 = vadd.f32 %v660, %v827
    %v829 = vpop.f32.mrf.mxu0
    %830 = vdwg.mxu0
    %831 = vmatprep.subr.mxu0 0.0
    %v832 = vand.u32 %v33, 4294901760
    %833 = vmatpush1.msra.mxu0 %v832
    %834 = vmatprep.subr.mxu0 0.0
    %v835 = vand.u32 %v32, 4294901760
    %836 = vmatpush1.msra.mxu0 %v835
    %837 = vmatprep.subr.mxu0 0.0
    %v838 = vand.u32 %v31, 4294901760
    %839 = vmatpush1.msra.mxu0 %v838
    %840 = vmatprep.subr.mxu0 0.0
    %v841 = vand.u32 %v30, 4294901760
    %842 = vmatpush1.msra.mxu0 %v841
    %843 = vmatprep.subr.mxu0 0.0
    %v844 = vand.u32 %v29, 4294901760
    %845 = vmatpush1.msra.mxu0 %v844
    %846 = vmatprep.subr.mxu0 0.0
    %v847 = vand.u32 %v28, 4294901760
    %848 = vmatpush1.msra.mxu0 %v847
    %849 = vmatprep.subr.mxu0 0.0
    %v850 = vand.u32 %v27, 4294901760
    %851 = vmatpush1.msra.mxu0 %v850
    %852 = vmatprep.subr.mxu0 0.0
    %v853 = vand.u32 %v26, 4294901760
    %854 = vmatpush1.msra.mxu0 %v853
    %855 = vmatprep.subr.mxu0 0.0
    %v856 = vand.u32 %v25, 4294901760
    %857 = vmatpush1.msra.mxu0 %v856
    %858 = vmatprep.subr.mxu0 0.0
    %v859 = vand.u32 %v24, 4294901760
    %860 = vmatpush1.msra.mxu0 %v859
    %861 = vmatprep.subr.mxu0 0.0
    %v862 = vand.u32 %v23, 4294901760
    %863 = vmatpush1.msra.mxu0 %v862
    %864 = vmatprep.subr.mxu0 0.0
    %v865 = vand.u32 %v22, 4294901760
    %866 = vmatpush1.msra.mxu0 %v865
    %867 = vmatprep.subr.mxu0 0.0
    %v868 = vand.u32 %v21, 4294901760
    %869 = vmatpush1.msra.mxu0 %v868
    %870 = vmatprep.subr.mxu0 0.0
    %v871 = vand.u32 %v20, 4294901760
    %872 = vmatpush1.msra.mxu0 %v871
    %873 = vmatprep.subr.mxu0 0.0
    %v874 = vand.u32 %v19, 4294901760
    %875 = vmatpush1.msra.mxu0 %v874
    %876 = vmatprep.subr.mxu0 0.0
    %v877 = vand.u32 %v18, 4294901760
    %878 = vmatpush1.msra.mxu0 %v877
    %879 = vmatprep.subr.mxu0 0.0
    %v880 = vand.u32 %v49, 4294901760
    %881 = vmatpush2.msra.mxu0 %v880
    %882 = vmatprep.subr.mxu0 0.0
    %v883 = vand.u32 %v48, 4294901760
    %884 = vmatpush2.msra.mxu0 %v883
    %885 = vmatprep.subr.mxu0 0.0
    %v886 = vand.u32 %v47, 4294901760
    %887 = vmatpush2.msra.mxu0 %v886
    %888 = vmatprep.subr.mxu0 0.0
    %v889 = vand.u32 %v46, 4294901760
    %890 = vmatpush2.msra.mxu0 %v889
    %891 = vmatprep.subr.mxu0 0.0
    %v892 = vand.u32 %v45, 4294901760
    %893 = vmatpush2.msra.mxu0 %v892
    %894 = vmatprep.subr.mxu0 0.0
    %v895 = vand.u32 %v44, 4294901760
    %896 = vmatpush2.msra.mxu0 %v895
    %897 = vmatprep.subr.mxu0 0.0
    %v898 = vand.u32 %v43, 4294901760
    %899 = vmatpush2.msra.mxu0 %v898
    %900 = vmatprep.subr.mxu0 0.0
    %v901 = vand.u32 %v42, 4294901760
    %902 = vmatpush2.msra.mxu0 %v901
    %903 = vmatprep.subr.mxu0 0.0
    %v904 = vand.u32 %v41, 4294901760
    %905 = vmatpush2.msra.mxu0 %v904
    %906 = vmatprep.subr.mxu0 0.0
    %v907 = vand.u32 %v40, 4294901760
    %908 = vmatpush2.msra.mxu0 %v907
    %909 = vmatprep.subr.mxu0 0.0
    %v910 = vand.u32 %v39, 4294901760
    %911 = vmatpush2.msra.mxu0 %v910
    %912 = vmatprep.subr.mxu0 0.0
    %v913 = vand.u32 %v38, 4294901760
    %914 = vmatpush2.msra.mxu0 %v913
    %915 = vmatprep.subr.mxu0 0.0
    %v916 = vand.u32 %v37, 4294901760
    %917 = vmatpush2.msra.mxu0 %v916
    %918 = vmatprep.subr.mxu0 0.0
    %v919 = vand.u32 %v36, 4294901760
    %920 = vmatpush2.msra.mxu0 %v919
    %921 = vmatprep.subr.mxu0 0.0
    %v922 = vand.u32 %v35, 4294901760
    %923 = vmatpush2.msra.mxu0 %v922
    %924 = vmatprep.subr.mxu0 0.0
    %v925 = vand.u32 %v34, 4294901760
    %926 = vmatpush2.msra.mxu0 %v925
    %v927 = vand.u32 %v16, 4294901760
    %928 = vmatprep.mubr.f32.mxu0 %v927
    %v929 = vand.u32 %v15, 4294901760
    %930 = vmatmul.mubr.f32.gmra.mxu0 %v929
    %v931 = vpop.f32.mrf.mxu0
    %v932 = vadd.f32 %v828, %v931
    %v933 = vpop.f32.mrf.mxu0
    %934 = vdwg.mxu0
    %935 = vmatprep.subr.mxu0 0.0
    %v936 = vand.u32 %v65, 4294901760
    %937 = vmatpush1.msra.mxu0 %v936
    %938 = vmatprep.subr.mxu0 0.0
    %v939 = vand.u32 %v64, 4294901760
    %940 = vmatpush1.msra.mxu0 %v939
    %941 = vmatprep.subr.mxu0 0.0
    %v942 = vand.u32 %v63, 4294901760
    %943 = vmatpush1.msra.mxu0 %v942
    %944 = vmatprep.subr.mxu0 0.0
    %v945 = vand.u32 %v62, 4294901760
    %946 = vmatpush1.msra.mxu0 %v945
    %947 = vmatprep.subr.mxu0 0.0
    %v948 = vand.u32 %v61, 4294901760
    %949 = vmatpush1.msra.mxu0 %v948
    %950 = vmatprep.subr.mxu0 0.0
    %v951 = vand.u32 %v60, 4294901760
    %952 = vmatpush1.msra.mxu0 %v951
    %953 = vmatprep.subr.mxu0 0.0
    %v954 = vand.u32 %v59, 4294901760
    %955 = vmatpush1.msra.mxu0 %v954
    %956 = vmatprep.subr.mxu0 0.0
    %v957 = vand.u32 %v58, 4294901760
    %958 = vmatpush1.msra.mxu0 %v957
    %959 = vmatprep.subr.mxu0 0.0
    %v960 = vand.u32 %v57, 4294901760
    %961 = vmatpush1.msra.mxu0 %v960
    %962 = vmatprep.subr.mxu0 0.0
    %v963 = vand.u32 %v56, 4294901760
    %964 = vmatpush1.msra.mxu0 %v963
    %965 = vmatprep.subr.mxu0 0.0
    %v966 = vand.u32 %v55, 4294901760
    %967 = vmatpush1.msra.mxu0 %v966
    %968 = vmatprep.subr.mxu0 0.0
    %v969 = vand.u32 %v54, 4294901760
    %970 = vmatpush1.msra.mxu0 %v969
    %971 = vmatprep.subr.mxu0 0.0
    %v972 = vand.u32 %v53, 4294901760
    %973 = vmatpush1.msra.mxu0 %v972
    %974 = vmatprep.subr.mxu0 0.0
    %v975 = vand.u32 %v52, 4294901760
    %976 = vmatpush1.msra.mxu0 %v975
    %977 = vmatprep.subr.mxu0 0.0
    %v978 = vand.u32 %v51, 4294901760
    %979 = vmatpush1.msra.mxu0 %v978
    %980 = vmatprep.subr.mxu0 0.0
    %v981 = vand.u32 %v50, 4294901760
    %982 = vmatpush1.msra.mxu0 %v981
    %983 = vmatprep.subr.mxu0 0.0
    %984 = vmatpush2.msra.mxu0 0.0
    %985 = vmatprep.subr.mxu0 0.0
    %986 = vmatpush2.msra.mxu0 0.0
    %987 = vmatprep.subr.mxu0 0.0
    %988 = vmatpush2.msra.mxu0 0.0
    %989 = vmatprep.subr.mxu0 0.0
    %990 = vmatpush2.msra.mxu0 0.0
    %991 = vmatprep.subr.mxu0 0.0
    %992 = vmatpush2.msra.mxu0 0.0
    %993 = vmatprep.subr.mxu0 0.0
    %994 = vmatpush2.msra.mxu0 0.0
    %995 = vmatprep.subr.mxu0 0.0
    %996 = vmatpush2.msra.mxu0 0.0
    %997 = vmatprep.subr.mxu0 0.0
    %998 = vmatpush2.msra.mxu0 0.0
    %999 = vmatprep.subr.mxu0 0.0
    %1000 = vmatpush2.msra.mxu0 0.0
    %1001 = vmatprep.subr.mxu0 0.0
    %1002 = vmatpush2.msra.mxu0 0.0
    %1003 = vmatprep.subr.mxu0 0.0
    %1004 = vmatpush2.msra.mxu0 0.0
    %1005 = vmatprep.subr.mxu0 0.0
    %1006 = vmatpush2.msra.mxu0 0.0
    %1007 = vmatprep.subr.mxu0 0.0
    %1008 = vmatpush2.msra.mxu0 0.0
    %1009 = vmatprep.subr.mxu0 0.0
    %1010 = vmatpush2.msra.mxu0 0.0
    %1011 = vmatprep.subr.mxu0 0.0
    %1012 = vmatpush2.msra.mxu0 0.0
    %1013 = vmatprep.subr.mxu0 0.0
    %1014 = vmatpush2.msra.mxu0 0.0
    %1015 = vmatprep.mubr.f32.mxu0 0.0
    %v1016 = vand.u32 %v17, 4294901760
    %v1017 = vsub.f32 %v17, %v1016
    %v1018 = vand.u32 %v1017, 4294901760
    %v1019 = vsub.f32 %v1017, %v1018
    %v1020 = vand.u32 %v1019, 4294901760
    %1021 = vmatmul.mubr.f32.gmra.mxu0 %v1020
    %v1022 = vpop.f32.mrf.mxu0
    %v1023 = vadd.f32 %v932, %v1022
    %v1024 = vpop.f32.mrf.mxu0
    %1025 = vdwg.mxu0
    %1026 = vmatprep.subr.mxu0 0.0
    %v1027 = vand.u32 %v65, 4294901760
    %v1028 = vsub.f32 %v65, %v1027
    %v1029 = vand.u32 %v1028, 4294901760
    %v1030 = vsub.f32 %v1028, %v1029
    %v1031 = vand.u32 %v1030, 4294901760
    %1032 = vmatpush1.msra.mxu0 %v1031
    %1033 = vmatprep.subr.mxu0 0.0
    %v1034 = vand.u32 %v64, 4294901760
    %v1035 = vsub.f32 %v64, %v1034
    %v1036 = vand.u32 %v1035, 4294901760
    %v1037 = vsub.f32 %v1035, %v1036
    %v1038 = vand.u32 %v1037, 4294901760
    %1039 = vmatpush1.msra.mxu0 %v1038
    %1040 = vmatprep.subr.mxu0 0.0
    %v1041 = vand.u32 %v63, 4294901760
    %v1042 = vsub.f32 %v63, %v1041
    %v1043 = vand.u32 %v1042, 4294901760
    %v1044 = vsub.f32 %v1042, %v1043
    %v1045 = vand.u32 %v1044, 4294901760
    %1046 = vmatpush1.msra.mxu0 %v1045
    %1047 = vmatprep.subr.mxu0 0.0
    %v1048 = vand.u32 %v62, 4294901760
    %v1049 = vsub.f32 %v62, %v1048
    %v1050 = vand.u32 %v1049, 4294901760
    %v1051 = vsub.f32 %v1049, %v1050
    %v1052 = vand.u32 %v1051, 4294901760
    %1053 = vmatpush1.msra.mxu0 %v1052
    %1054 = vmatprep.subr.mxu0 0.0
    %v1055 = vand.u32 %v61, 4294901760
    %v1056 = vsub.f32 %v61, %v1055
    %v1057 = vand.u32 %v1056, 4294901760
    %v1058 = vsub.f32 %v1056, %v1057
    %v1059 = vand.u32 %v1058, 4294901760
    %1060 = vmatpush1.msra.mxu0 %v1059
    %1061 = vmatprep.subr.mxu0 0.0
    %v1062 = vand.u32 %v60, 4294901760
    %v1063 = vsub.f32 %v60, %v1062
    %v1064 = vand.u32 %v1063, 4294901760
    %v1065 = vsub.f32 %v1063, %v1064
    %v1066 = vand.u32 %v1065, 4294901760
    %1067 = vmatpush1.msra.mxu0 %v1066
    %1068 = vmatprep.subr.mxu0 0.0
    %v1069 = vand.u32 %v59, 4294901760
    %v1070 = vsub.f32 %v59, %v1069
    %v1071 = vand.u32 %v1070, 4294901760
    %v1072 = vsub.f32 %v1070, %v1071
    %v1073 = vand.u32 %v1072, 4294901760
    %1074 = vmatpush1.msra.mxu0 %v1073
    %1075 = vmatprep.subr.mxu0 0.0
    %v1076 = vand.u32 %v58, 4294901760
    %v1077 = vsub.f32 %v58, %v1076
    %v1078 = vand.u32 %v1077, 4294901760
    %v1079 = vsub.f32 %v1077, %v1078
    %v1080 = vand.u32 %v1079, 4294901760
    %1081 = vmatpush1.msra.mxu0 %v1080
    %1082 = vmatprep.subr.mxu0 0.0
    %v1083 = vand.u32 %v57, 4294901760
    %v1084 = vsub.f32 %v57, %v1083
    %v1085 = vand.u32 %v1084, 4294901760
    %v1086 = vsub.f32 %v1084, %v1085
    %v1087 = vand.u32 %v1086, 4294901760
    %1088 = vmatpush1.msra.mxu0 %v1087
    %1089 = vmatprep.subr.mxu0 0.0
    %v1090 = vand.u32 %v56, 4294901760
    %v1091 = vsub.f32 %v56, %v1090
    %v1092 = vand.u32 %v1091, 4294901760
    %v1093 = vsub.f32 %v1091, %v1092
    %v1094 = vand.u32 %v1093, 4294901760
    %1095 = vmatpush1.msra.mxu0 %v1094
    %1096 = vmatprep.subr.mxu0 0.0
    %v1097 = vand.u32 %v55, 4294901760
    %v1098 = vsub.f32 %v55, %v1097
    %v1099 = vand.u32 %v1098, 4294901760
    %v1100 = vsub.f32 %v1098, %v1099
    %v1101 = vand.u32 %v1100, 4294901760
    %1102 = vmatpush1.msra.mxu0 %v1101
    %1103 = vmatprep.subr.mxu0 0.0
    %v1104 = vand.u32 %v54, 4294901760
    %v1105 = vsub.f32 %v54, %v1104
    %v1106 = vand.u32 %v1105, 4294901760
    %v1107 = vsub.f32 %v1105, %v1106
    %v1108 = vand.u32 %v1107, 4294901760
    %1109 = vmatpush1.msra.mxu0 %v1108
    %1110 = vmatprep.subr.mxu0 0.0
    %v1111 = vand.u32 %v53, 4294901760
    %v1112 = vsub.f32 %v53, %v1111
    %v1113 = vand.u32 %v1112, 4294901760
    %v1114 = vsub.f32 %v1112, %v1113
    %v1115 = vand.u32 %v1114, 4294901760
    %1116 = vmatpush1.msra.mxu0 %v1115
    %1117 = vmatprep.subr.mxu0 0.0
    %v1118 = vand.u32 %v52, 4294901760
    %v1119 = vsub.f32 %v52, %v1118
    %v1120 = vand.u32 %v1119, 4294901760
    %v1121 = vsub.f32 %v1119, %v1120
    %v1122 = vand.u32 %v1121, 4294901760
    %1123 = vmatpush1.msra.mxu0 %v1122
    %1124 = vmatprep.subr.mxu0 0.0
    %v1125 = vand.u32 %v51, 4294901760
    %v1126 = vsub.f32 %v51, %v1125
    %v1127 = vand.u32 %v1126, 4294901760
    %v1128 = vsub.f32 %v1126, %v1127
    %v1129 = vand.u32 %v1128, 4294901760
    %1130 = vmatpush1.msra.mxu0 %v1129
    %1131 = vmatprep.subr.mxu0 0.0
    %v1132 = vand.u32 %v50, 4294901760
    %v1133 = vsub.f32 %v50, %v1132
    %v1134 = vand.u32 %v1133, 4294901760
    %v1135 = vsub.f32 %v1133, %v1134
    %v1136 = vand.u32 %v1135, 4294901760
    %1137 = vmatpush1.msra.mxu0 %v1136
    %1138 = vmatprep.subr.mxu0 0.0
    %1139 = vmatpush2.msra.mxu0 0.0
    %1140 = vmatprep.subr.mxu0 0.0
    %1141 = vmatpush2.msra.mxu0 0.0
    %1142 = vmatprep.subr.mxu0 0.0
    %1143 = vmatpush2.msra.mxu0 0.0
    %1144 = vmatprep.subr.mxu0 0.0
    %1145 = vmatpush2.msra.mxu0 0.0
    %1146 = vmatprep.subr.mxu0 0.0
    %1147 = vmatpush2.msra.mxu0 0.0
    %1148 = vmatprep.subr.mxu0 0.0
    %1149 = vmatpush2.msra.mxu0 0.0
    %1150 = vmatprep.subr.mxu0 0.0
    %1151 = vmatpush2.msra.mxu0 0.0
    %1152 = vmatprep.subr.mxu0 0.0
    %1153 = vmatpush2.msra.mxu0 0.0
    %1154 = vmatprep.subr.mxu0 0.0
    %1155 = vmatpush2.msra.mxu0 0.0
    %1156 = vmatprep.subr.mxu0 0.0
    %1157 = vmatpush2.msra.mxu0 0.0
    %1158 = vmatprep.subr.mxu0 0.0
    %1159 = vmatpush2.msra.mxu0 0.0
    %1160 = vmatprep.subr.mxu0 0.0
    %1161 = vmatpush2.msra.mxu0 0.0
    %1162 = vmatprep.subr.mxu0 0.0
    %1163 = vmatpush2.msra.mxu0 0.0
    %1164 = vmatprep.subr.mxu0 0.0
    %1165 = vmatpush2.msra.mxu0 0.0
    %1166 = vmatprep.subr.mxu0 0.0
    %1167 = vmatpush2.msra.mxu0 0.0
    %1168 = vmatprep.subr.mxu0 0.0
    %1169 = vmatpush2.msra.mxu0 0.0
    %1170 = vmatprep.mubr.f32.mxu0 0.0
    %v1171 = vand.u32 %v17, 4294901760
    %1172 = vmatmul.mubr.f32.gmra.mxu0 %v1171
    %v1173 = vpop.f32.mrf.mxu0
    %v1174 = vadd.f32 %v1023, %v1173
    %v1175 = vpop.f32.mrf.mxu0
    %1176 = vdwg.mxu0
    %1177 = vmatprep.subr.mxu0 0.0
    %v1178 = vand.u32 %v65, 4294901760
    %v1179 = vsub.f32 %v65, %v1178
    %1180 = vmatpush1.msra.mxu0 %v1179
    %1181 = vmatprep.subr.mxu0 0.0
    %v1182 = vand.u32 %v64, 4294901760
    %v1183 = vsub.f32 %v64, %v1182
    %1184 = vmatpush1.msra.mxu0 %v1183
    %1185 = vmatprep.subr.mxu0 0.0
    %v1186 = vand.u32 %v63, 4294901760
    %v1187 = vsub.f32 %v63, %v1186
    %1188 = vmatpush1.msra.mxu0 %v1187
    %1189 = vmatprep.subr.mxu0 0.0
    %v1190 = vand.u32 %v62, 4294901760
    %v1191 = vsub.f32 %v62, %v1190
    %1192 = vmatpush1.msra.mxu0 %v1191
    %1193 = vmatprep.subr.mxu0 0.0
    %v1194 = vand.u32 %v61, 4294901760
    %v1195 = vsub.f32 %v61, %v1194
    %1196 = vmatpush1.msra.mxu0 %v1195
    %1197 = vmatprep.subr.mxu0 0.0
    %v1198 = vand.u32 %v60, 4294901760
    %v1199 = vsub.f32 %v60, %v1198
    %1200 = vmatpush1.msra.mxu0 %v1199
    %1201 = vmatprep.subr.mxu0 0.0
    %v1202 = vand.u32 %v59, 4294901760
    %v1203 = vsub.f32 %v59, %v1202
    %1204 = vmatpush1.msra.mxu0 %v1203
    %1205 = vmatprep.subr.mxu0 0.0
    %v1206 = vand.u32 %v58, 4294901760
    %v1207 = vsub.f32 %v58, %v1206
    %1208 = vmatpush1.msra.mxu0 %v1207
    %1209 = vmatprep.subr.mxu0 0.0
    %v1210 = vand.u32 %v57, 4294901760
    %v1211 = vsub.f32 %v57, %v1210
    %1212 = vmatpush1.msra.mxu0 %v1211
    %1213 = vmatprep.subr.mxu0 0.0
    %v1214 = vand.u32 %v56, 4294901760
    %v1215 = vsub.f32 %v56, %v1214
    %1216 = vmatpush1.msra.mxu0 %v1215
    %1217 = vmatprep.subr.mxu0 0.0
    %v1218 = vand.u32 %v55, 4294901760
    %v1219 = vsub.f32 %v55, %v1218
    %1220 = vmatpush1.msra.mxu0 %v1219
    %1221 = vmatprep.subr.mxu0 0.0
    %v1222 = vand.u32 %v54, 4294901760
    %v1223 = vsub.f32 %v54, %v1222
    %1224 = vmatpush1.msra.mxu0 %v1223
    %1225 = vmatprep.subr.mxu0 0.0
    %v1226 = vand.u32 %v53, 4294901760
    %v1227 = vsub.f32 %v53, %v1226
    %1228 = vmatpush1.msra.mxu0 %v1227
    %1229 = vmatprep.subr.mxu0 0.0
    %v1230 = vand.u32 %v52, 4294901760
    %v1231 = vsub.f32 %v52, %v1230
    %1232 = vmatpush1.msra.mxu0 %v1231
    %1233 = vmatprep.subr.mxu0 0.0
    %v1234 = vand.u32 %v51, 4294901760
    %v1235 = vsub.f32 %v51, %v1234
    %1236 = vmatpush1.msra.mxu0 %v1235
    %1237 = vmatprep.subr.mxu0 0.0
    %v1238 = vand.u32 %v50, 4294901760
    %v1239 = vsub.f32 %v50, %v1238
    %1240 = vmatpush1.msra.mxu0 %v1239
    %1241 = vmatprep.subr.mxu0 0.0
    %1242 = vmatpush2.msra.mxu0 0.0
    %1243 = vmatprep.subr.mxu0 0.0
    %1244 = vmatpush2.msra.mxu0 0.0
    %1245 = vmatprep.subr.mxu0 0.0
    %1246 = vmatpush2.msra.mxu0 0.0
    %1247 = vmatprep.subr.mxu0 0.0
    %1248 = vmatpush2.msra.mxu0 0.0
    %1249 = vmatprep.subr.mxu0 0.0
    %1250 = vmatpush2.msra.mxu0 0.0
    %1251 = vmatprep.subr.mxu0 0.0
    %1252 = vmatpush2.msra.mxu0 0.0
    %1253 = vmatprep.subr.mxu0 0.0
    %1254 = vmatpush2.msra.mxu0 0.0
    %1255 = vmatprep.subr.mxu0 0.0
    %1256 = vmatpush2.msra.mxu0 0.0
    %1257 = vmatprep.subr.mxu0 0.0
    %1258 = vmatpush2.msra.mxu0 0.0
    %1259 = vmatprep.subr.mxu0 0.0
    %1260 = vmatpush2.msra.mxu0 0.0
    %1261 = vmatprep.subr.mxu0 0.0
    %1262 = vmatpush2.msra.mxu0 0.0
    %1263 = vmatprep.subr.mxu0 0.0
    %1264 = vmatpush2.msra.mxu0 0.0
    %1265 = vmatprep.subr.mxu0 0.0
    %1266 = vmatpush2.msra.mxu0 0.0
    %1267 = vmatprep.subr.mxu0 0.0
    %1268 = vmatpush2.msra.mxu0 0.0
    %1269 = vmatprep.subr.mxu0 0.0
    %1270 = vmatpush2.msra.mxu0 0.0
    %1271 = vmatprep.subr.mxu0 0.0
    %1272 = vmatpush2.msra.mxu0 0.0
    %1273 = vmatprep.mubr.f32.mxu0 0.0
    %v1274 = vand.u32 %v17, 4294901760
    %v1275 = vsub.f32 %v17, %v1274
    %1276 = vmatmul.mubr.f32.gmra.mxu0 %v1275
    %v1277 = vpop.f32.mrf.mxu0
    %v1278 = vadd.f32 %v1174, %v1277
    %v1279 = vpop.f32.mrf.mxu0
    %1280 = vdwg.mxu0
    %1281 = vmatprep.subr.mxu0 0.0
    %v1282 = vand.u32 %v65, 4294901760
    %1283 = vmatpush1.msra.mxu0 %v1282
    %1284 = vmatprep.subr.mxu0 0.0
    %v1285 = vand.u32 %v64, 4294901760
    %1286 = vmatpush1.msra.mxu0 %v1285
    %1287 = vmatprep.subr.mxu0 0.0
    %v1288 = vand.u32 %v63, 4294901760
    %1289 = vmatpush1.msra.mxu0 %v1288
    %1290 = vmatprep.subr.mxu0 0.0
    %v1291 = vand.u32 %v62, 4294901760
    %1292 = vmatpush1.msra.mxu0 %v1291
    %1293 = vmatprep.subr.mxu0 0.0
    %v1294 = vand.u32 %v61, 4294901760
    %1295 = vmatpush1.msra.mxu0 %v1294
    %1296 = vmatprep.subr.mxu0 0.0
    %v1297 = vand.u32 %v60, 4294901760
    %1298 = vmatpush1.msra.mxu0 %v1297
    %1299 = vmatprep.subr.mxu0 0.0
    %v1300 = vand.u32 %v59, 4294901760
    %1301 = vmatpush1.msra.mxu0 %v1300
    %1302 = vmatprep.subr.mxu0 0.0
    %v1303 = vand.u32 %v58, 4294901760
    %1304 = vmatpush1.msra.mxu0 %v1303
    %1305 = vmatprep.subr.mxu0 0.0
    %v1306 = vand.u32 %v57, 4294901760
    %1307 = vmatpush1.msra.mxu0 %v1306
    %1308 = vmatprep.subr.mxu0 0.0
    %v1309 = vand.u32 %v56, 4294901760
    %1310 = vmatpush1.msra.mxu0 %v1309
    %1311 = vmatprep.subr.mxu0 0.0
    %v1312 = vand.u32 %v55, 4294901760
    %1313 = vmatpush1.msra.mxu0 %v1312
    %1314 = vmatprep.subr.mxu0 0.0
    %v1315 = vand.u32 %v54, 4294901760
    %1316 = vmatpush1.msra.mxu0 %v1315
    %1317 = vmatprep.subr.mxu0 0.0
    %v1318 = vand.u32 %v53, 4294901760
    %1319 = vmatpush1.msra.mxu0 %v1318
    %1320 = vmatprep.subr.mxu0 0.0
    %v1321 = vand.u32 %v52, 4294901760
    %1322 = vmatpush1.msra.mxu0 %v1321
    %1323 = vmatprep.subr.mxu0 0.0
    %v1324 = vand.u32 %v51, 4294901760
    %1325 = vmatpush1.msra.mxu0 %v1324
    %1326 = vmatprep.subr.mxu0 0.0
    %v1327 = vand.u32 %v50, 4294901760
    %1328 = vmatpush1.msra.mxu0 %v1327
    %1329 = vmatprep.subr.mxu0 0.0
    %1330 = vmatpush2.msra.mxu0 0.0
    %1331 = vmatprep.subr.mxu0 0.0
    %1332 = vmatpush2.msra.mxu0 0.0
    %1333 = vmatprep.subr.mxu0 0.0
    %1334 = vmatpush2.msra.mxu0 0.0
    %1335 = vmatprep.subr.mxu0 0.0
    %1336 = vmatpush2.msra.mxu0 0.0
    %1337 = vmatprep.subr.mxu0 0.0
    %1338 = vmatpush2.msra.mxu0 0.0
    %1339 = vmatprep.subr.mxu0 0.0
    %1340 = vmatpush2.msra.mxu0 0.0
    %1341 = vmatprep.subr.mxu0 0.0
    %1342 = vmatpush2.msra.mxu0 0.0
    %1343 = vmatprep.subr.mxu0 0.0
    %1344 = vmatpush2.msra.mxu0 0.0
    %1345 = vmatprep.subr.mxu0 0.0
    %1346 = vmatpush2.msra.mxu0 0.0
    %1347 = vmatprep.subr.mxu0 0.0
    %1348 = vmatpush2.msra.mxu0 0.0
    %1349 = vmatprep.subr.mxu0 0.0
    %1350 = vmatpush2.msra.mxu0 0.0
    %1351 = vmatprep.subr.mxu0 0.0
    %1352 = vmatpush2.msra.mxu0 0.0
    %1353 = vmatprep.subr.mxu0 0.0
    %1354 = vmatpush2.msra.mxu0 0.0
    %1355 = vmatprep.subr.mxu0 0.0
    %1356 = vmatpush2.msra.mxu0 0.0
    %1357 = vmatprep.subr.mxu0 0.0
    %1358 = vmatpush2.msra.mxu0 0.0
    %1359 = vmatprep.subr.mxu0 0.0
    %1360 = vmatpush2.msra.mxu0 0.0
    %1361 = vmatprep.mubr.f32.mxu0 0.0
    %v1362 = vand.u32 %v17, 4294901760
    %v1363 = vsub.f32 %v17, %v1362
    %v1364 = vand.u32 %v1363, 4294901760
    %1365 = vmatmul.mubr.f32.gmra.mxu0 %v1364
    %v1366 = vpop.f32.mrf.mxu0
    %v1367 = vadd.f32 %v1278, %v1366
    %v1368 = vpop.f32.mrf.mxu0
    %1369 = vdwg.mxu0
    %1370 = vmatprep.subr.mxu0 0.0
    %v1371 = vand.u32 %v65, 4294901760
    %v1372 = vsub.f32 %v65, %v1371
    %v1373 = vand.u32 %v1372, 4294901760
    %1374 = vmatpush1.msra.mxu0 %v1373
    %1375 = vmatprep.subr.mxu0 0.0
    %v1376 = vand.u32 %v64, 4294901760
    %v1377 = vsub.f32 %v64, %v1376
    %v1378 = vand.u32 %v1377, 4294901760
    %1379 = vmatpush1.msra.mxu0 %v1378
    %1380 = vmatprep.subr.mxu0 0.0
    %v1381 = vand.u32 %v63, 4294901760
    %v1382 = vsub.f32 %v63, %v1381
    %v1383 = vand.u32 %v1382, 4294901760
    %1384 = vmatpush1.msra.mxu0 %v1383
    %1385 = vmatprep.subr.mxu0 0.0
    %v1386 = vand.u32 %v62, 4294901760
    %v1387 = vsub.f32 %v62, %v1386
    %v1388 = vand.u32 %v1387, 4294901760
    %1389 = vmatpush1.msra.mxu0 %v1388
    %1390 = vmatprep.subr.mxu0 0.0
    %v1391 = vand.u32 %v61, 4294901760
    %v1392 = vsub.f32 %v61, %v1391
    %v1393 = vand.u32 %v1392, 4294901760
    %1394 = vmatpush1.msra.mxu0 %v1393
    %1395 = vmatprep.subr.mxu0 0.0
    %v1396 = vand.u32 %v60, 4294901760
    %v1397 = vsub.f32 %v60, %v1396
    %v1398 = vand.u32 %v1397, 4294901760
    %1399 = vmatpush1.msra.mxu0 %v1398
    %1400 = vmatprep.subr.mxu0 0.0
    %v1401 = vand.u32 %v59, 4294901760
    %v1402 = vsub.f32 %v59, %v1401
    %v1403 = vand.u32 %v1402, 4294901760
    %1404 = vmatpush1.msra.mxu0 %v1403
    %1405 = vmatprep.subr.mxu0 0.0
    %v1406 = vand.u32 %v58, 4294901760
    %v1407 = vsub.f32 %v58, %v1406
    %v1408 = vand.u32 %v1407, 4294901760
    %1409 = vmatpush1.msra.mxu0 %v1408
    %1410 = vmatprep.subr.mxu0 0.0
    %v1411 = vand.u32 %v57, 4294901760
    %v1412 = vsub.f32 %v57, %v1411
    %v1413 = vand.u32 %v1412, 4294901760
    %1414 = vmatpush1.msra.mxu0 %v1413
    %1415 = vmatprep.subr.mxu0 0.0
    %v1416 = vand.u32 %v56, 4294901760
    %v1417 = vsub.f32 %v56, %v1416
    %v1418 = vand.u32 %v1417, 4294901760
    %1419 = vmatpush1.msra.mxu0 %v1418
    %1420 = vmatprep.subr.mxu0 0.0
    %v1421 = vand.u32 %v55, 4294901760
    %v1422 = vsub.f32 %v55, %v1421
    %v1423 = vand.u32 %v1422, 4294901760
    %1424 = vmatpush1.msra.mxu0 %v1423
    %1425 = vmatprep.subr.mxu0 0.0
    %v1426 = vand.u32 %v54, 4294901760
    %v1427 = vsub.f32 %v54, %v1426
    %v1428 = vand.u32 %v1427, 4294901760
    %1429 = vmatpush1.msra.mxu0 %v1428
    %1430 = vmatprep.subr.mxu0 0.0
    %v1431 = vand.u32 %v53, 4294901760
    %v1432 = vsub.f32 %v53, %v1431
    %v1433 = vand.u32 %v1432, 4294901760
    %1434 = vmatpush1.msra.mxu0 %v1433
    %1435 = vmatprep.subr.mxu0 0.0
    %v1436 = vand.u32 %v52, 4294901760
    %v1437 = vsub.f32 %v52, %v1436
    %v1438 = vand.u32 %v1437, 4294901760
    %1439 = vmatpush1.msra.mxu0 %v1438
    %1440 = vmatprep.subr.mxu0 0.0
    %v1441 = vand.u32 %v51, 4294901760
    %v1442 = vsub.f32 %v51, %v1441
    %v1443 = vand.u32 %v1442, 4294901760
    %1444 = vmatpush1.msra.mxu0 %v1443
    %1445 = vmatprep.subr.mxu0 0.0
    %v1446 = vand.u32 %v50, 4294901760
    %v1447 = vsub.f32 %v50, %v1446
    %v1448 = vand.u32 %v1447, 4294901760
    %1449 = vmatpush1.msra.mxu0 %v1448
    %1450 = vmatprep.subr.mxu0 0.0
    %1451 = vmatpush2.msra.mxu0 0.0
    %1452 = vmatprep.subr.mxu0 0.0
    %1453 = vmatpush2.msra.mxu0 0.0
    %1454 = vmatprep.subr.mxu0 0.0
    %1455 = vmatpush2.msra.mxu0 0.0
    %1456 = vmatprep.subr.mxu0 0.0
    %1457 = vmatpush2.msra.mxu0 0.0
    %1458 = vmatprep.subr.mxu0 0.0
    %1459 = vmatpush2.msra.mxu0 0.0
    %1460 = vmatprep.subr.mxu0 0.0
    %1461 = vmatpush2.msra.mxu0 0.0
    %1462 = vmatprep.subr.mxu0 0.0
    %1463 = vmatpush2.msra.mxu0 0.0
    %1464 = vmatprep.subr.mxu0 0.0
    %1465 = vmatpush2.msra.mxu0 0.0
    %1466 = vmatprep.subr.mxu0 0.0
    %1467 = vmatpush2.msra.mxu0 0.0
    %1468 = vmatprep.subr.mxu0 0.0
    %1469 = vmatpush2.msra.mxu0 0.0
    %1470 = vmatprep.subr.mxu0 0.0
    %1471 = vmatpush2.msra.mxu0 0.0
    %1472 = vmatprep.subr.mxu0 0.0
    %1473 = vmatpush2.msra.mxu0 0.0
    %1474 = vmatprep.subr.mxu0 0.0
    %1475 = vmatpush2.msra.mxu0 0.0
    %1476 = vmatprep.subr.mxu0 0.0
    %1477 = vmatpush2.msra.mxu0 0.0
    %1478 = vmatprep.subr.mxu0 0.0
    %1479 = vmatpush2.msra.mxu0 0.0
    %1480 = vmatprep.subr.mxu0 0.0
    %1481 = vmatpush2.msra.mxu0 0.0
    %1482 = vmatprep.mubr.f32.mxu0 0.0
    %v1483 = vand.u32 %v17, 4294901760
    %1484 = vmatmul.mubr.f32.gmra.mxu0 %v1483
    %v1485 = vpop.f32.mrf.mxu0
    %v1486 = vadd.f32 %v1367, %v1485
    %v1487 = vpop.f32.mrf.mxu0
    %1488 = vdwg.mxu0
    %1489 = vmatprep.subr.mxu0 0.0
    %v1490 = vand.u32 %v65, 4294901760
    %1491 = vmatpush1.msra.mxu0 %v1490
    %1492 = vmatprep.subr.mxu0 0.0
    %v1493 = vand.u32 %v64, 4294901760
    %1494 = vmatpush1.msra.mxu0 %v1493
    %1495 = vmatprep.subr.mxu0 0.0
    %v1496 = vand.u32 %v63, 4294901760
    %1497 = vmatpush1.msra.mxu0 %v1496
    %1498 = vmatprep.subr.mxu0 0.0
    %v1499 = vand.u32 %v62, 4294901760
    %1500 = vmatpush1.msra.mxu0 %v1499
    %1501 = vmatprep.subr.mxu0 0.0
    %v1502 = vand.u32 %v61, 4294901760
    %1503 = vmatpush1.msra.mxu0 %v1502
    %1504 = vmatprep.subr.mxu0 0.0
    %v1505 = vand.u32 %v60, 4294901760
    %1506 = vmatpush1.msra.mxu0 %v1505
    %1507 = vmatprep.subr.mxu0 0.0
    %v1508 = vand.u32 %v59, 4294901760
    %1509 = vmatpush1.msra.mxu0 %v1508
    %1510 = vmatprep.subr.mxu0 0.0
    %v1511 = vand.u32 %v58, 4294901760
    %1512 = vmatpush1.msra.mxu0 %v1511
    %1513 = vmatprep.subr.mxu0 0.0
    %v1514 = vand.u32 %v57, 4294901760
    %1515 = vmatpush1.msra.mxu0 %v1514
    %1516 = vmatprep.subr.mxu0 0.0
    %v1517 = vand.u32 %v56, 4294901760
    %1518 = vmatpush1.msra.mxu0 %v1517
    %1519 = vmatprep.subr.mxu0 0.0
    %v1520 = vand.u32 %v55, 4294901760
    %1521 = vmatpush1.msra.mxu0 %v1520
    %1522 = vmatprep.subr.mxu0 0.0
    %v1523 = vand.u32 %v54, 4294901760
    %1524 = vmatpush1.msra.mxu0 %v1523
    %1525 = vmatprep.subr.mxu0 0.0
    %v1526 = vand.u32 %v53, 4294901760
    %1527 = vmatpush1.msra.mxu0 %v1526
    %1528 = vmatprep.subr.mxu0 0.0
    %v1529 = vand.u32 %v52, 4294901760
    %1530 = vmatpush1.msra.mxu0 %v1529
    %1531 = vmatprep.subr.mxu0 0.0
    %v1532 = vand.u32 %v51, 4294901760
    %1533 = vmatpush1.msra.mxu0 %v1532
    %1534 = vmatprep.subr.mxu0 0.0
    %v1535 = vand.u32 %v50, 4294901760
    %1536 = vmatpush1.msra.mxu0 %v1535
    %1537 = vmatprep.subr.mxu0 0.0
    %1538 = vmatpush2.msra.mxu0 0.0
    %1539 = vmatprep.subr.mxu0 0.0
    %1540 = vmatpush2.msra.mxu0 0.0
    %1541 = vmatprep.subr.mxu0 0.0
    %1542 = vmatpush2.msra.mxu0 0.0
    %1543 = vmatprep.subr.mxu0 0.0
    %1544 = vmatpush2.msra.mxu0 0.0
    %1545 = vmatprep.subr.mxu0 0.0
    %1546 = vmatpush2.msra.mxu0 0.0
    %1547 = vmatprep.subr.mxu0 0.0
    %1548 = vmatpush2.msra.mxu0 0.0
    %1549 = vmatprep.subr.mxu0 0.0
    %1550 = vmatpush2.msra.mxu0 0.0
    %1551 = vmatprep.subr.mxu0 0.0
    %1552 = vmatpush2.msra.mxu0 0.0
    %1553 = vmatprep.subr.mxu0 0.0
    %1554 = vmatpush2.msra.mxu0 0.0
    %1555 = vmatprep.subr.mxu0 0.0
    %1556 = vmatpush2.msra.mxu0 0.0
    %1557 = vmatprep.subr.mxu0 0.0
    %1558 = vmatpush2.msra.mxu0 0.0
    %1559 = vmatprep.subr.mxu0 0.0
    %1560 = vmatpush2.msra.mxu0 0.0
    %1561 = vmatprep.subr.mxu0 0.0
    %1562 = vmatpush2.msra.mxu0 0.0
    %1563 = vmatprep.subr.mxu0 0.0
    %1564 = vmatpush2.msra.mxu0 0.0
    %1565 = vmatprep.subr.mxu0 0.0
    %1566 = vmatpush2.msra.mxu0 0.0
    %1567 = vmatprep.subr.mxu0 0.0
    %1568 = vmatpush2.msra.mxu0 0.0
    %1569 = vmatprep.mubr.f32.mxu0 0.0
    %v1570 = vand.u32 %v17, 4294901760
    %1571 = vmatmul.mubr.f32.gmra.mxu0 %v1570
    %v1572 = vpop.f32.mrf.mxu0
    %v1573 = vadd.f32 %v1486, %v1572
    %v1574 = vpop.f32.mrf.mxu0
    %1575 = vdwg.mxu0
    %1576 = vst [vmem:[#allocation2] sm:$0xff] %v1573
    // Predicated region
    $region14: #{linear_forward.1} parent=1 // pred_check
      _
    $region15: #{linear_forward.1} parent=1 // pred_check_branch
      %1578 = sbr.rel (0) target = $region17
    $region16: #{linear_forward.1} parent=1 // pred_region
      %s1580 = ssub.s32 128, 128
      %1581 = vsyncadd [#allocation3], %s1580
      %s1583 = sshll.u32 [#allocation2], 4
      %s1584 = int_to_ptr.vmem [resolvable:$true] %s1583
      %1586 = dma.vmem_to_hbm [thread:$0]  %s1584, 128, %s3, [#allocation3]
    $region17: #{linear_forward.1} parent=1 // pred_fallthru
      _
    // Predicated region
    $region18: #{linear_forward.1} parent=1 // pred_check
      _
    $region19: #{linear_forward.1} parent=1 // pred_check_branch
      %1588 = sbr.rel (0) target = $region21
    $region20: #{linear_forward.1} parent=1 // pred_region
      %1589 = dma.done [#allocation3], 128
    $region21: #{linear_forward.1} parent=1 // pred_fallthru
      _
    %1590 = vsyncpa [#allocation3], 1

</llo_original>
